<compile_context>
chip_gen: v7x
topology: tpu7x:2x2x1
jax: 0.10.0
libtpu: 0.0.40
codegen_flags: <defaults>
</compile_context>

<pallas_src>
import functools
import math

import jax
import jax.numpy as jnp
from jax.experimental import pallas as pl
from jax.experimental.pallas import tpu as pltpu


def _mixed_augment_kernel(prob_ref, mag_ref, w_ref, x_ref, out_ref, *, policy_len):
    # prob_ref / mag_ref: SMEM (num_policies * policy_len,) f32, row-major flattened
    # w_ref             : SMEM (1,) i32 -- selected sub-policy index
    # x_ref / out_ref   : VMEM (TM, LD) tile of the flattened image
    k = w_ref[0]
    base = k * policy_len

    # policy_len is a tiny compile-time constant -> static unroll on the scalar core
    # (hidden under the tile DMA for this bandwidth-bound kernel).
    s = jnp.float32(0.0)
    for i in range(policy_len):
        p = prob_ref[base + i]
        m = mag_ref[base + i]
        # probability_b[i].item() != 0.0  -> include magnitude[i]
        s = s + jnp.where(p != 0.0, m, jnp.float32(0.0))
    s = s.astype(x_ref.dtype)

    x = x_ref[...]
    # images = (images - adds).detach() + adds   (forward value; NOT the identity —
    # it intentionally reproduces the rounding/cancellation of the torch op)
    out_ref[...] = (x - s) + s


_LD_CANDIDATES = (8192, 4096, 2048, 1024, 512, 256, 128)


def _lane_dense(total):
    """Pick a lane width LD (multiple of 128) and required flat padding."""
    for ld in _LD_CANDIDATES:
        if total % ld == 0:
            return ld, 0
    ld = 1024 if total >= 1024 else 128
    pad = (-total) % ld
    return ld, pad


def _vmem_budget_bytes():
    """Generation-aware budget for (2 arrays x 2 pipeline buffers x tile)."""
    try:
        kind = jax.devices()[0].device_kind.lower()
    except Exception:  # pragma: no cover - defensive
        kind = ""
    if "v5e" in kind or "v5 lite" in kind or "v5lite" in kind:
        return 14 << 20          # stay under v5e's 16 MiB scoped default
    if "v6" in kind or "v7" in kind:
        return 28 << 20          # 7 MiB tiles; v7x has only 64 MiB physical VMEM
    return 12 << 20              # conservative for unknown generations


def _choose_tm(rows, max_tm, sub):
    """Largest sublane-aligned row-tile <= max_tm, preferring one that divides rows."""
    if max_tm >= rows:
        return rows              # full extent -> exempt from the (8,128) rule
    base = max(sub, (max_tm // sub) * sub)
    base = min(base, rows)
    # Prefer a divisor of rows near base (>= base//2) to avoid a ragged last step.
    t = base
    while t >= max(sub, base // 2):
        if rows % t == 0:
            return t
        t -= sub
    return base


def mixed_augment(origin_images, probabilities_b, magnitudes, weights_b, *,
                  small_input_bytes=2 << 20, donate_input=False):
    """origin_images: (N, C, H, W); probabilities_b/magnitudes: (P, L);
    weights_b: scalar int (sub-policy index).

    Set donate_input=True only if the caller actually donates origin_images
    (jax.jit(..., donate_argnums=...)); otherwise the alias would force a copy.
    """
    shape = origin_images.shape
    dtype = origin_images.dtype
    itemsize = jnp.dtype(dtype).itemsize
    total = math.prod(shape)

    num_policies, policy_len = probabilities_b.shape
    k = jnp.asarray(weights_b, jnp.int32)

    # Small or non-float inputs: a fused XLA elementwise op beats kernel-launch +
    # single-grid-step overhead; integers are computed in f32 (torch promotes with a
    # Python float scalar) and cast back at the end.
    if (not jnp.issubdtype(dtype, jnp.floating)) or total * itemsize < small_input_bytes:
        pk = probabilities_b[k].astype(jnp.float32)
        mk = magnitudes[k].astype(jnp.float32)
        s = jnp.sum(jnp.where(pk != 0.0, mk, jnp.float32(0.0)))
        if jnp.issubdtype(dtype, jnp.floating):
            s = s.astype(dtype)
            return (origin_images - s) + s
        xf = origin_images.astype(jnp.float32)
        return ((xf - s) + s).astype(dtype)

    # ---------------- Pallas path ----------------
    ld, pad = _lane_dense(total)
    x_flat = origin_images.reshape(total)
    if pad:
        # Pad instead of a masked last-dim fallback: keeps stores unmasked full-lane.
        x_flat = jnp.pad(x_flat, (0, pad))
    rows = (total + pad) // ld
    x2d = x_flat.reshape(rows, ld)

    # 1D SMEM tables avoid the [ceil(R/8)*8, ceil(C/128)*128] 2D-SMEM padding.
    prob = probabilities_b.astype(jnp.float32).reshape(num_policies * policy_len)
    mag = magnitudes.astype(jnp.float32).reshape(num_policies * policy_len)
    w = k.reshape((1,))

    budget = _vmem_budget_bytes()
    # sublane packing granularity: f32 -> 8, bf16 -> 16, int8/fp8 -> 32
    sub = max(8, 32 // itemsize)
    # 2 arrays (x, out) x 2 pipeline buffers x (TM * LD * itemsize) <= budget
    max_tm = max(1, budget // (4 * ld * itemsize))
    tm = _choose_tm(rows, max_tm, sub)
    grid = (pl.cdiv(rows, tm),)

    compiler_kwargs = dict(dimension_semantics=("parallel",))
    if budget > (14 << 20):
        # Give Mosaic headroom above the scoped default; well below v7x's 64 MiB.
        compiler_kwargs["vmem_limit_bytes"] = min(48 << 20, budget + (8 << 20))

    aliases = {3: 0} if donate_input else {}

    out2d = pl.pallas_call(
        functools.partial(_mixed_augment_kernel, policy_len=policy_len),
        out_shape=jax.ShapeDtypeStruct(x2d.shape, dtype),
        grid=grid,
        in_specs=[
            pl.BlockSpec(memory_space=pltpu.MemorySpace.SMEM),   # prob table (1D)
            pl.BlockSpec(memory_space=pltpu.MemorySpace.SMEM),   # magnitude table (1D)
            pl.BlockSpec(memory_space=pltpu.MemorySpace.SMEM),   # selected policy index
            pl.BlockSpec((tm, ld), lambda i: (i, 0)),            # image row-tile
        ],
        out_specs=pl.BlockSpec((tm, ld), lambda i: (i, 0)),
        input_output_aliases=aliases,
        compiler_params=pltpu.CompilerParams(**compiler_kwargs),
        cost_estimate=pl.CostEstimate(
            flops=2 * total, transcendentals=0,
            bytes_accessed=2 * total * itemsize),
    )(prob, mag, w, x2d)

    out_flat = out2d.reshape(rows * ld)
    if pad:
        out_flat = out_flat[:total]
    return out_flat.reshape(shape)


if __name__ == "__main__":
    key = jax.random.PRNGKey(0)
    k1, k2, k3 = jax.random.split(key, 3)

    N, C, H, W = 2, 4, 16, 16          # small NCHW batch
    num_policies, policy_len = 3, 2    # sub_policies: 3 policies of length 2

    origin_images = jax.random.normal(k1, (N, C, H, W), dtype=jnp.float32)
    # Bernoulli-like 0/1 probabilities (as the DFKD training loop samples them)
    probabilities_b = (jax.random.uniform(k2, (num_policies, policy_len)) > 0.5).astype(jnp.float32)
    magnitudes = jax.random.uniform(k3, (num_policies, policy_len), dtype=jnp.float32)
    weights_b = jnp.int32(1)           # torch: weights_b.item()

    # small_input_bytes=0 forces the Pallas path even at this tiny demo size so the
    # kernel itself is exercised (production callers keep the default short-circuit).
    mixed_augment_jit = jax.jit(functools.partial(mixed_augment, small_input_bytes=0))
    out = mixed_augment_jit(origin_images, probabilities_b, magnitudes, weights_b)
    jax.block_until_ready(out)

    # Reference (pure JAX) check of forward semantics.
    kidx = int(weights_b)
    s_ref = jnp.sum(jnp.where(probabilities_b[kidx] != 0.0, magnitudes[kidx], 0.0))
    ref = (origin_images - s_ref) + s_ref
    assert out.shape == origin_images.shape and out.dtype == origin_images.dtype
    assert jnp.allclose(out, ref, atol=1e-5), "mismatch vs reference"

    print("KERNEL_OK")
</pallas_src>

<mosaic_0001>
module attributes {stable_mosaic.version = 11 : i64} {
  func.func @_mixed_augment_kernel(%arg0: i32, %arg1: memref<6xf32, #tpu.memory_space<smem>>, %arg2: memref<6xf32, #tpu.memory_space<smem>>, %arg3: memref<1xi32, #tpu.memory_space<smem>>, %arg4: memref<1x2048xf32, #tpu.memory_space<vmem>>, %arg5: memref<1x2048xf32, #tpu.memory_space<vmem>>) attributes {dimension_semantics = [#tpu.dimension_semantics<parallel>], iteration_bounds = array<i64: 1>, scalar_prefetch = 0 : i64, scratch_operands = 0 : i64, tpu.core_type = #tpu.core_type<tc>, window_params = [{transform_indices = @transform_0, window_bounds = array<i64: 6>}, {transform_indices = @transform_1, window_bounds = array<i64: 6>}, {transform_indices = @transform_2, window_bounds = array<i64: 1>}, {transform_indices = @transform_3, window_bounds = array<i64: 1, 2048>}, {transform_indices = @transform_4, window_bounds = array<i64: 1, 2048>}]} {
    %c0 = arith.constant 0 : index
    %0 = memref.load %arg3[%c0] : memref<1xi32, #tpu.memory_space<smem>>
    %c2_i32 = arith.constant 2 : i32
    %1 = arith.muli %0, %c2_i32 : i32
    %c0_i32 = arith.constant 0 : i32
    %2 = arith.addi %1, %c0_i32 : i32
    %3 = arith.index_cast %2 : i32 to index
    %4 = memref.load %arg1[%3] : memref<6xf32, #tpu.memory_space<smem>>
    %c0_i32_0 = arith.constant 0 : i32
    %5 = arith.addi %1, %c0_i32_0 : i32
    %6 = arith.index_cast %5 : i32 to index
    %7 = memref.load %arg2[%6] : memref<6xf32, #tpu.memory_space<smem>>
    %cst = arith.constant 0.000000e+00 : f32
    %8 = arith.cmpf one, %4, %cst : f32
    %cst_1 = arith.constant 0.000000e+00 : f32
    %9 = arith.select %8, %7, %cst_1 : f32
    %cst_2 = arith.constant 0.000000e+00 : f32
    %10 = arith.addf %cst_2, %9 : f32
    %c1_i32 = arith.constant 1 : i32
    %11 = arith.addi %1, %c1_i32 : i32
    %12 = arith.index_cast %11 : i32 to index
    %13 = memref.load %arg1[%12] : memref<6xf32, #tpu.memory_space<smem>>
    %c1_i32_3 = arith.constant 1 : i32
    %14 = arith.addi %1, %c1_i32_3 : i32
    %15 = arith.index_cast %14 : i32 to index
    %16 = memref.load %arg2[%15] : memref<6xf32, #tpu.memory_space<smem>>
    %cst_4 = arith.constant 0.000000e+00 : f32
    %17 = arith.cmpf one, %13, %cst_4 : f32
    %cst_5 = arith.constant 0.000000e+00 : f32
    %18 = arith.select %17, %16, %cst_5 : f32
    %19 = arith.addf %10, %18 : f32
    %c0_6 = arith.constant 0 : index
    %c0_7 = arith.constant 0 : index
    %20 = vector.load %arg4[%c0_6, %c0_7] : memref<1x2048xf32, #tpu.memory_space<vmem>>, vector<1x2048xf32>
    %21 = vector.broadcast %19 : f32 to vector<1x2048xf32>
    %22 = arith.subf %20, %21 : vector<1x2048xf32>
    %23 = vector.broadcast %19 : f32 to vector<1x2048xf32>
    %24 = arith.addf %22, %23 : vector<1x2048xf32>
    %c0_8 = arith.constant 0 : index
    %c0_9 = arith.constant 0 : index
    %25 = vector.load %arg5[%c0_8, %c0_9] : memref<1x2048xf32, #tpu.memory_space<vmem>>, vector<1x2048xf32>
    tpu.vector_store %arg5[%c0_8, %c0_9], %24 {strides = array<i32>} : memref<1x2048xf32, #tpu.memory_space<vmem>>, vector<1x2048xf32>,
    return
  }
  func.func @transform_0(%arg0: i32) -> i32 {
    %c0_i32 = arith.constant 0 : i32
    %c0_i32_0 = arith.constant 0 : i32
    return %c0_i32 : i32
  }
  func.func @transform_1(%arg0: i32) -> i32 {
    %c0_i32 = arith.constant 0 : i32
    %c0_i32_0 = arith.constant 0 : i32
    return %c0_i32 : i32
  }
  func.func @transform_2(%arg0: i32) -> i32 {
    %c0_i32 = arith.constant 0 : i32
    %c0_i32_0 = arith.constant 0 : i32
    return %c0_i32 : i32
  }
  func.func @transform_3(%arg0: i32) -> (i32, i32) {
    %c0_i32 = arith.constant 0 : i32
    %c0_i32_0 = arith.constant 0 : i32
    return %arg0, %c0_i32 : i32, i32
  }
  func.func @transform_4(%arg0: i32) -> (i32, i32) {
    %c0_i32 = arith.constant 0 : i32
    %c0_i32_0 = arith.constant 0 : i32
    return %arg0, %c0_i32 : i32, i32
  }
}

</mosaic_0001>

<llo_original>
// kernel: mixed_augment.1
$region0: #{mixed_augment.1}
  #allocation0 [shape = 'u32[]', space=smem, size = 0x4, offset = 0x4, fixed_abs, tag = 'smem constant byte address 0x4 - core index']
  #allocation1 [shape = 'u32[144,128]{1,0:T(1,128)}', space=vmem, size = 0x12000, scoped, tag = 'internal scratch']
  #allocation2 [shape = 's32[1]{0:T(128)S(6)}', space=smem, size = 0x200, scoped, tag = 'scoped memory for mixed_augment.1']
  %s0 = inlined_call_operand.vmem [shape: f32[6], index: 0, kind: input, shape index: {}]
  %s1 = inlined_call_operand.vmem [shape: f32[6], index: 1, kind: input, shape index: {}]
  %s2 = inlined_call_operand.<no memory space> [shape: s32[1], index: 2, kind: input, shape index: {}]
  %s3 = inlined_call_operand.vmem [shape: f32[1,2048], index: 3, kind: input, shape index: {}]
  %s4 = inlined_call_operand.vmem [shape: f32[1,2048], index: 4, kind: output, shape index: {}]
  %s5 = sld [smem:[#allocation0]]
  $region34: #{mixed_augment.1} parent=0
    _
  %s7 = ssub.s32 1, %s5
  %s8 = scalar_select 0, %s7, %s5
  %9 = sst [smem:[#allocation2]] %s2
  $region1: #{mixed_augment.1} parent=0
    #allocation3 [shape = 'u8[512]{0}', space=smem, size = 0x200, scoped, tag = 'input window, operand 0, single buffered']
    #allocation4 [shape = 's32[1]{0}', space=sflag, size = 0x4, scoped, tag = 'scoped memory for mixed_augment.1']
    #allocation5 [shape = 'u8[512]{0}', space=smem, size = 0x200, scoped, tag = 'input window, operand 1, single buffered']
    #allocation6 [shape = 's32[1]{0}', space=sflag, size = 0x4, scoped, tag = 'scoped memory for mixed_augment.1']
    %10 = vsyncpa [#allocation4], 0
    %11 = vsyncpa [#allocation6], 0
    // Predicated region
    $region2: #{mixed_augment.1} parent=1 // pred_check
      _
    $region3: #{mixed_augment.1} parent=1 // pred_check_branch
      %13 = sbr.rel (0) target = $region5
    $region4: #{mixed_augment.1} parent=1 // pred_region
      %s15 = ssub.s32 16, 16
      %16 = vsyncadd [#allocation4], %s15
      %s18 = sshll.u32 %s0, 4
      %s19 = int_to_ptr.vmem [resolvable:$true] %s18
      %21 = dma.vmem_to_smem %s19, 16, [#allocation3], [#allocation4]
    $region5: #{mixed_augment.1} parent=1 // pred_fallthru
      _
    // Predicated region
    $region6: #{mixed_augment.1} parent=1 // pred_check
      _
    $region7: #{mixed_augment.1} parent=1 // pred_check_branch
      %23 = sbr.rel (0) target = $region9
    $region8: #{mixed_augment.1} parent=1 // pred_region
      %s25 = ssub.s32 16, 16
      %26 = vsyncadd [#allocation6], %s25
      %s28 = sshll.u32 %s1, 4
      %s29 = int_to_ptr.vmem [resolvable:$true] %s28
      %31 = dma.vmem_to_smem %s29, 16, [#allocation5], [#allocation6]
    $region9: #{mixed_augment.1} parent=1 // pred_fallthru
      _
    // Predicated region
    $region10: #{mixed_augment.1} parent=1 // pred_check
      _
    $region11: #{mixed_augment.1} parent=1 // pred_check_branch
      %33 = sbr.rel (0) target = $region13
    $region12: #{mixed_augment.1} parent=1 // pred_region
      _
    $region13: #{mixed_augment.1} parent=1 // pred_fallthru
      _
    // Predicated region
    $region14: #{mixed_augment.1} parent=1 // pred_check
      _
    $region15: #{mixed_augment.1} parent=1 // pred_check_branch
      %35 = sbr.rel (0) target = $region17
    $region16: #{mixed_augment.1} parent=1 // pred_region
      _
    $region17: #{mixed_augment.1} parent=1 // pred_fallthru
      _
    // Predicated region
    $region18: #{mixed_augment.1} parent=1 // pred_check
      _
    $region19: #{mixed_augment.1} parent=1 // pred_check_branch
      %37 = sbr.rel (0) target = $region21
    $region20: #{mixed_augment.1} parent=1 // pred_region
      %38 = dma.done [#allocation4], 16
    $region21: #{mixed_augment.1} parent=1 // pred_fallthru
      _
    // Predicated region
    $region22: #{mixed_augment.1} parent=1 // pred_check
      _
    $region23: #{mixed_augment.1} parent=1 // pred_check_branch
      %40 = sbr.rel (0) target = $region25
    $region24: #{mixed_augment.1} parent=1 // pred_region
      %41 = dma.done [#allocation6], 16
    $region25: #{mixed_augment.1} parent=1 // pred_fallthru
      _
    %42 = sfence
    %s43 = sld [smem:[#allocation2]]
    %s44 = smul.u32 %s43, 2
    %s45 = sld [smem:[#allocation3 + %s44]]
    %s46 = sld [smem:[#allocation5 + %s44]]
    %p47 = scmp.ne.f32.partialorder %s45, 0.0
    %s48 = scalar_select %p47, %s46, 0.0
    %s49 = sadd.f32 %s48, 0.0
    %s50 = sadd.s32 %s44, 1
    %s51 = sld [smem:[#allocation3 + %s50]]
    %s52 = sld [smem:[#allocation5 + %s50]]
    %p53 = scmp.ne.f32.partialorder %s51, 0.0
    %s54 = scalar_select %p53, %s52, 0.0
    %s55 = sadd.f32 %s49, %s54
    %v56 = vld [vmem:[%s3] sm:$0xff]
    %v57 = vld [vmem:[%s3 + $0x8] sm:$0xff]
    %v58 = vstv %s55
    %v59 = vsub.f32 %v56, %v58
    %v60 = vsub.f32 %v57, %v58
    %v61 = vadd.f32 %v59, %v58
    %v62 = vadd.f32 %v60, %v58
    %63 = vst [vmem:[%s4] sm:$0xff] %v61
    %64 = vst [vmem:[%s4 + $0x8] sm:$0xff] %v62
    // Predicated region
    $region26: #{mixed_augment.1} parent=1 // pred_check
      _
    $region27: #{mixed_augment.1} parent=1 // pred_check_branch
      %66 = sbr.rel (0) target = $region29
    $region28: #{mixed_augment.1} parent=1 // pred_region
      _
    $region29: #{mixed_augment.1} parent=1 // pred_fallthru
      _
    // Predicated region
    $region30: #{mixed_augment.1} parent=1 // pred_check
      _
    $region31: #{mixed_augment.1} parent=1 // pred_check_branch
      %68 = sbr.rel (0) target = $region33
    $region32: #{mixed_augment.1} parent=1 // pred_region
      _
    $region33: #{mixed_augment.1} parent=1 // pred_fallthru
      _
    %69 = vsyncpa [#allocation4], 1
    %70 = vsyncpa [#allocation6], 1

</llo_original>
